<compile_context>
chip_gen: v5e
topology: v5e:2x2
jax: 0.10.0
libtpu: 0.0.40
codegen_flags: <defaults>
</compile_context>

<pallas_src>
import jax
import jax.numpy as jnp
from jax.experimental import pallas as pl
from jax.experimental.pallas import tpu as pltpu


def _sig_t_kernel(w_ref, t_ref):
    c, tn = w_ref.shape
    # Upcast once; all math in f32.
    w = w_ref[...].astype(jnp.float32)
    sig = jax.nn.sigmoid(w)

    # Global column index of this tile's first column.
    col_base = pl.program_id(0) * tn
    rows = jax.lax.broadcasted_iota(jnp.int32, (c, tn), 0)
    cols = jax.lax.broadcasted_iota(jnp.int32, (c, tn), 1) + col_base

    # Fused mask: T = I + sig * (1 - I)  ==  where(on-diagonal, 1, sig)
    t = jnp.where(rows == cols, jnp.ones_like(sig), sig)

    # L1 column norm == column sum (every entry >= 0), clamped like F.normalize.
    denom = jnp.maximum(jnp.sum(t, axis=0, keepdims=True), 1e-12)  # (1, TN)
    inv = pl.reciprocal(denom, approx=False)  # exact: keeps 1e-6 tolerance

    t_ref[...] = (t * inv).astype(t_ref.dtype)


def sig_t_forward(w: jax.Array, tn: int | None = None) -> jax.Array:
    """Pallas forward of sig_t: T = L1-column-normalize(I + sigmoid(w) * (1 - I))."""
    c = w.shape[0]

    if tn is None:
        if c % 128 == 0:
            # Lane-dense column tiles, 128 <= TN <= 512, evenly dividing C.
            tn = min(512, c)
            while c % tn != 0:
                tn //= 2
        else:
            # Small / irregular C: single full-array block (always a legal block shape).
            tn = c
    assert c % tn == 0 and (tn == c or tn % 128 == 0), (c, tn)

    grid = (c // tn,)
    return pl.pallas_call(
        _sig_t_kernel,
        out_shape=jax.ShapeDtypeStruct((c, c), w.dtype),
        grid_spec=pltpu.PrefetchScalarGridSpec(
            num_scalar_prefetch=0,
            grid=grid,
            in_specs=[pl.BlockSpec((c, tn), lambda j: (0, j))],
            out_specs=pl.BlockSpec((c, tn), lambda j: (0, j)),
        ),
        compiler_params=pltpu.CompilerParams(
            dimension_semantics=("parallel",),  # shards column tiles across v7x's 2 TCs
        ),
    )(w)


def init_sig_t_params(num_classes: int, init: float = 2.0) -> jax.Array:
    # Matches nn.Parameter(-init * torch.ones(num_classes, num_classes)).
    return -init * jnp.ones((num_classes, num_classes), dtype=jnp.float32)


def _reference(w: jax.Array) -> jax.Array:
    c = w.shape[0]
    sig = jax.nn.sigmoid(w)
    eye = jnp.eye(c, dtype=w.dtype)
    t = eye + sig * (jnp.ones((c, c), dtype=w.dtype) - eye)
    denom = jnp.maximum(jnp.sum(jnp.abs(t), axis=0, keepdims=True), 1e-12)
    return t / denom


if __name__ == "__main__":
    key = jax.random.PRNGKey(0)

    # --- Case 1: module-sized small C (single full-array block path). ---
    num_classes = 10
    w_small = init_sig_t_params(num_classes, init=2.0)
    w_small = w_small + 0.1 * jax.random.normal(
        key, (num_classes, num_classes), dtype=jnp.float32
    )
    out_small = jax.block_until_ready(sig_t_forward(w_small))
    ref_small = _reference(w_small)
    assert out_small.shape == (num_classes, num_classes)
    assert jnp.allclose(out_small, ref_small, atol=1e-6, rtol=1e-6)
    assert jnp.allclose(jnp.sum(out_small, axis=0), jnp.ones((num_classes,)), atol=1e-5)

    # --- Case 2: lane-dense, multi-tile column grid (exercises tiled path). ---
    c_big = 256
    key2 = jax.random.PRNGKey(0)
    w_big = init_sig_t_params(c_big, init=2.0) + 0.1 * jax.random.normal(
        key2, (c_big, c_big), dtype=jnp.float32
    )
    out_big = jax.block_until_ready(sig_t_forward(w_big, tn=128))  # grid=(2,)
    ref_big = _reference(w_big)
    assert out_big.shape == (c_big, c_big)
    assert jnp.allclose(out_big, ref_big, atol=1e-6, rtol=1e-6)
    assert jnp.allclose(jnp.sum(out_big, axis=0), jnp.ones((c_big,)), atol=1e-4)

    print("KERNEL_OK")
</pallas_src>

<mosaic_0001>
module attributes {stable_mosaic.version = 11 : i64} {
  func.func @_sig_t_kernel(%arg0: i32, %arg1: memref<10x10xf32, #tpu.memory_space<vmem>>, %arg2: memref<10x10xf32, #tpu.memory_space<vmem>>) attributes {dimension_semantics = [#tpu.dimension_semantics<parallel>], iteration_bounds = array<i64: 1>, scalar_prefetch = 0 : i64, scratch_operands = 0 : i64, tpu.core_type = #tpu.core_type<tc>, window_params = [{transform_indices = @transform_0, window_bounds = array<i64: 10, 10>}, {transform_indices = @transform_1, window_bounds = array<i64: 10, 10>}]} {
    %c0 = arith.constant 0 : index
    %c0_0 = arith.constant 0 : index
    %0 = vector.load %arg1[%c0, %c0_0] : memref<10x10xf32, #tpu.memory_space<vmem>>, vector<10x10xf32>
    %1 = arith.negf %0 : vector<10x10xf32>
    %2 = math.exp %1 : vector<10x10xf32>
    %cst = arith.constant 1.000000e+00 : f32
    %3 = vector.broadcast %cst : f32 to vector<10x10xf32>
    %4 = arith.addf %3, %2 : vector<10x10xf32>
    %5 = arith.divf %3, %4 : vector<10x10xf32>
    %c10_i32 = arith.constant 10 : i32
    %6 = arith.muli %arg0, %c10_i32 : i32
    %7 = tpu.iota {dimensions = array<i32: 0>} : vector<10x10xi32>
    %8 = tpu.iota {dimensions = array<i32: 1>} : vector<10x10xi32>
    %9 = vector.broadcast %6 : i32 to vector<10x10xi32>
    %10 = arith.addi %8, %9 : vector<10x10xi32>
    %11 = arith.cmpi eq, %7, %10 : vector<10x10xi32>
    %cst_1 = arith.constant 1.000000e+00 : f32
    %12 = vector.broadcast %cst_1 : f32 to vector<10x10xf32>
    %13 = arith.select %11, %12, %5 : vector<10x10xi1>, vector<10x10xf32>
    %cst_2 = arith.constant dense<0.000000e+00> : vector<10xf32>
    %14 = vector.multi_reduction <add>, %13, %cst_2 [0] : vector<10x10xf32> to vector<10xf32>
    %15 = vector.shape_cast %14 : vector<10xf32> to vector<1x10xf32>
    %cst_3 = arith.constant 9.99999996E-13 : f32
    %16 = vector.broadcast %cst_3 : f32 to vector<1x10xf32>
    %17 = arith.maximumf %15, %16 : vector<1x10xf32>
    %18 = tpu.reciprocal %17 : vector<1x10xf32> -> vector<1x10xf32>
    %19 = vector.broadcast %18 : vector<1x10xf32> to vector<10x10xf32>
    %20 = arith.mulf %13, %19 : vector<10x10xf32>
    %c0_4 = arith.constant 0 : index
    %c0_5 = arith.constant 0 : index
    %21 = vector.load %arg2[%c0_4, %c0_5] : memref<10x10xf32, #tpu.memory_space<vmem>>, vector<10x10xf32>
    tpu.vector_store %arg2[%c0_4, %c0_5], %20 {strides = array<i32>} : memref<10x10xf32, #tpu.memory_space<vmem>>, vector<10x10xf32>,
    return
  }
  func.func @transform_0(%arg0: i32) -> (i32, i32) {
    %c0_i32 = arith.constant 0 : i32
    %c0_i32_0 = arith.constant 0 : i32
    return %c0_i32, %arg0 : i32, i32
  }
  func.func @transform_1(%arg0: i32) -> (i32, i32) {
    %c0_i32 = arith.constant 0 : i32
    %c0_i32_0 = arith.constant 0 : i32
    return %c0_i32, %arg0 : i32, i32
  }
}

</mosaic_0001>

<llo_original>
// kernel: tpu_custom_call.1
$region0: #{tpu_custom_call.1}
  #allocation0 [shape = 'u32[]', space=smem, size = 0x4, offset = 0x4, fixed_abs, tag = 'smem constant byte address 0x4 - core index']
  #allocation1 [shape = 'u32[72,128]{1,0:T(1,128)}', space=vmem, size = 0x9000, scoped, tag = 'internal scratch']
  %s0 = inlined_call_operand.hbm [shape: f32[10,10], index: 0, kind: input, shape index: {}]
  %s1 = inlined_call_operand.hbm [shape: f32[10,10], index: 1, kind: output, shape index: {}]
  %s2 = sld [smem:[#allocation0]]
  $region18: #{tpu_custom_call.1} parent=0
    _
  %s4 = ssub.s32 1, %s2
  %s5 = scalar_select 0, %s4, %s2
  $region1: #{tpu_custom_call.1} parent=0
    #allocation2 [shape = 'u8[8192]{0}', space=vmem, size = 0x2000, scoped, tag = 'input window, operand 0, single buffered']
    #allocation3 [shape = 's32[1]{0}', space=sflag, size = 0x4, scoped, tag = 'scoped memory for tpu_custom_call.1']
    #allocation4 [shape = 's32[1]{0}', space=sflag, size = 0x4, scoped, tag = 'scoped memory for tpu_custom_call.1']
    #allocation5 [shape = 'u8[8192]{0}', space=vmem, size = 0x2000, scoped, tag = 'output window, operand 0, single buffered']
    %6 = vsyncpa [#allocation3], 0
    %7 = vsyncpa [#allocation4], 0
    // Predicated region
    $region2: #{tpu_custom_call.1} parent=1 // pred_check
      _
    $region3: #{tpu_custom_call.1} parent=1 // pred_check_branch
      %9 = sbr.rel (0) target = $region5
    $region4: #{tpu_custom_call.1} parent=1 // pred_region
      %11 = vsyncadd [#allocation3], 0
      %s12 = sshll.u32 %s0, 4
      %s13 = int_to_ptr.hbm [resolvable:$true] %s12
      %s14 = sshll.u32 [#allocation2], 4
      %s15 = int_to_ptr.vmem [resolvable:$true] %s14
      %20 = dma.hbm_to_vmem [thread:$0]  %s13, 256, %s15, [#allocation3], 128, 128, 8
    $region5: #{tpu_custom_call.1} parent=1 // pred_fallthru
      _
    // Predicated region
    $region6: #{tpu_custom_call.1} parent=1 // pred_check
      _
    $region7: #{tpu_custom_call.1} parent=1 // pred_check_branch
      %22 = sbr.rel (0) target = $region9
    $region8: #{tpu_custom_call.1} parent=1 // pred_region
      %24 = dma.done [#allocation3], 256
    $region9: #{tpu_custom_call.1} parent=1 // pred_fallthru
      _
    %v25 = vld [vmem:[#allocation2] sm:$0xff]
    %v26 = vld [vmem:[#allocation2 + $0x8] sm:$0x3]
    %v27 = vxor.u32 %v25, 2147483648
    %v28 = vxor.u32 %v26, 2147483648
    %v29 = vmul.f32 %v27, 1.442695
    %v30 = vpow.pop %v29
    %v31 = vmul.f32 %v28, 1.442695
    %v32 = vpow.pop %v31
    %v33 = vadd.f32 %v30, 1.0
    %v34 = vadd.f32 %v32, 1.0
    %v35 = vrcp.pop %v33
    %v36 = vmul.f32 %v33, %v35
    %v37 = vsub.f32 1.0, %v36
    %v38 = vmul.f32 %v35, %v37
    %v39 = vadd.f32 %v35, %v38
    %vm40 = vweird.f32 %v33
    %vm41 = vweird.f32 %v35
    %vm42 = vmor %vm40, %vm41
    %v43 = vsel %vm42, %v35, %v39
    %v44 = vand.u32 2147483647, %v33
    %vm45 = vcmp.eq.f32.partialorder %v44, 8.507059e+37
    %v46 = vand.u32 %v33, 2147483648
    %v47 = vor.u32 1.1754944e-38, %v46
    %v48 = vsel %vm45, %v47, %v43
    %v49 = vmul.f32 1.0, %v48
    %v50 = vrcp.pop %v34
    %v51 = vmul.f32 %v34, %v50
    %v52 = vsub.f32 1.0, %v51
    %v53 = vmul.f32 %v50, %v52
    %v54 = vadd.f32 %v50, %v53
    %vm55 = vweird.f32 %v34
    %vm56 = vweird.f32 %v50
    %vm57 = vmor %vm55, %vm56
    %v58 = vsel %vm57, %v50, %v54
    %v59 = vand.u32 2147483647, %v34
    %vm60 = vcmp.eq.f32.partialorder %v59, 8.507059e+37
    %v61 = vand.u32 %v34, 2147483648
    %v62 = vor.u32 1.1754944e-38, %v61
    %v63 = vsel %vm60, %v62, %v58
    %v64 = vmul.f32 1.0, %v63
    %s65 = smul.u32 0, 10
    %v66 = vlaneseq
    %v67 = vshrl.u32 %v66, 7
    %v68 = vadd.s32 %v67, 8
    %v69 = vlaneseq
    %v70 = vand.u32 %v69, 127
    %v71 = vstv %s65
    %v72 = vadd.s32 %v70, %v71
    %vm73 = vcmp.eq.s32.totalorder %v67, %v72
    %vm74 = vcmp.eq.s32.totalorder %v68, %v72
    %v75 = vsel %vm73, 1.0, %v49
    %v76 = vsel %vm74, 1.0, %v64
    %vm77 = vcmask 80896
    %v78 = vsel %vm77, %v75, 0.0
    %vm79 = vcmask 74752
    %v80 = vsel %vm79, %v76, 0.0
    %v81 = vadd.f32 %v78, %v80
    %v82 = vrot.slane %v81, 4
    %v83 = vadd.f32 %v81, %v82
    %v84 = vrot.slane %v83, 2
    %v85 = vadd.f32 %v83, %v84
    %v86 = vrot.slane %v85, 1
    %v87 = vadd.f32 %v85, %v86
    %v88 = vmax.f32 %v87, 1e-12
    %v89 = vrcp.pop %v88
    %v90 = vmul.f32 %v88, %v89
    %v91 = vsub.f32 1.0, %v90
    %v92 = vmul.f32 %v89, %v91
    %v93 = vadd.f32 %v89, %v92
    %vm94 = vweird.f32 %v88
    %vm95 = vweird.f32 %v89
    %vm96 = vmor %vm94, %vm95
    %v97 = vsel %vm96, %v89, %v93
    %v98 = vand.u32 2147483647, %v88
    %vm99 = vcmp.eq.f32.partialorder %v98, 8.507059e+37
    %v100 = vand.u32 %v88, 2147483648
    %v101 = vor.u32 1.1754944e-38, %v100
    %v102 = vsel %vm99, %v101, %v97
    %v103 = vmul.f32 %v75, %v102
    %v104 = vmul.f32 %v76, %v102
    %105 = vst.msk [vmem:[#allocation5] sm:$0xff] %vm77, %v103
    %106 = vst.msk [vmem:[#allocation5 + $0x8] sm:$0x3] %vm79, %v104
    // Predicated region
    $region10: #{tpu_custom_call.1} parent=1 // pred_check
      _
    $region11: #{tpu_custom_call.1} parent=1 // pred_check_branch
      %108 = sbr.rel (0) target = $region13
    $region12: #{tpu_custom_call.1} parent=1 // pred_region
      %110 = vsyncadd [#allocation4], 0
      %s111 = sshll.u32 [#allocation5], 4
      %s112 = int_to_ptr.vmem [resolvable:$true] %s111
      %s113 = sshll.u32 %s1, 4
      %s114 = int_to_ptr.hbm [resolvable:$true] %s113
      %119 = dma.vmem_to_hbm [thread:$0]  %s112, 256, %s114, [#allocation4], 128, 128, 8
    $region13: #{tpu_custom_call.1} parent=1 // pred_fallthru
      _
    // Predicated region
    $region14: #{tpu_custom_call.1} parent=1 // pred_check
      _
    $region15: #{tpu_custom_call.1} parent=1 // pred_check_branch
      %121 = sbr.rel (0) target = $region17
    $region16: #{tpu_custom_call.1} parent=1 // pred_region
      %123 = dma.done [#allocation4], 256
    $region17: #{tpu_custom_call.1} parent=1 // pred_fallthru
      _
    %124 = vsyncpa [#allocation3], 1
    %125 = vsyncpa [#allocation4], 1

</llo_original>
